<compile_context>
chip_gen: v5e
topology: v5e:2x2
jax: 0.10.0
libtpu: 0.0.40
codegen_flags: <defaults>
</compile_context>

<pallas_src>
import jax
import jax.numpy as jnp
from jax.experimental import pallas as pl
from jax.experimental.pallas import tpu as pltpu


def _nonlocal_kernel(q_ref, part_ref, wq_ref, bq_ref, wp_ref, bp_ref,
                     param_ref, o_ref):
    """Fused nonLocal forward for one batch tile.

    q_ref, part_ref, o_ref : (TB, D)  VMEM
    wq_ref, wp_ref         : (D, D)   VMEM  (x @ W + b layout, W == torch weight.T)
    bq_ref, bp_ref         : (1, D)   VMEM
    param_ref              : (1,)     SMEM scalar
    """
    q = q_ref[...]
    p = part_ref[...]

    # conv_query / conv_part : MXU matmuls with f32 accumulation.
    f_query = jnp.dot(q, wq_ref[...], preferred_element_type=jnp.float32) + bq_ref[...]
    f_part = jnp.dot(p, wp_ref[...], preferred_element_type=jnp.float32) + bp_ref[...]

    # energy[b] = <f_query[b], f_part[b]>  -> (TB, 1)
    energy = jnp.sum(f_query * f_part, axis=-1, keepdims=True)

    # softmax over the trailing size-1 axis (== 1 for finite energy; NaN/Inf
    # propagate just like torch). Tiny (TB, 1) vector -> negligible cost.
    e = jnp.exp(energy - jnp.max(energy, axis=-1, keepdims=True))
    similarity = e / jnp.sum(e, axis=-1, keepdims=True)

    # f_value = f_part @ similarity + f_part  (per-row scalar broadcast)
    f_value = f_part * similarity + f_part

    # final_feat = query + f_value * param ; trailing singleton squeeze is implicit.
    out = q.astype(jnp.float32) + f_value * param_ref[0]
    o_ref[...] = out.astype(o_ref.dtype)


def non_local_forward(query, part, wq, bq, wp, bp, wv, bv, param,
                      *, tile_b: int = 256):
    """nonLocal forward. query, part: (B, D); wq/wp/wv: (D, D) used as x @ W + b
    (i.e. the transpose of the torch nn.Linear weight); bq/bp/bv: (D,);
    param: scalar/(1,). Returns (B, D) in query's dtype."""
    b, d = query.shape
    # conv_value's result is rebound before use in the reference forward (dead
    # compute) -> intentionally not recomputed.  Arguments kept for API parity.
    del wv, bv

    tb = b if b <= tile_b else tile_b          # batch tile (rows on sublanes)
    grid = (pl.cdiv(b, tb),)

    bq2 = bq.reshape(1, d)
    bp2 = bp.reshape(1, d)
    param1 = jnp.asarray(param, dtype=jnp.float32).reshape(1)

    row_spec = pl.BlockSpec((tb, d), lambda i: (i, 0))
    w_spec = pl.BlockSpec((d, d), lambda i: (0, 0))      # resident across grid
    bias_spec = pl.BlockSpec((1, d), lambda i: (0, 0))

    return pl.pallas_call(
        _nonlocal_kernel,
        out_shape=jax.ShapeDtypeStruct((b, d), query.dtype),
        grid_spec=pltpu.PrefetchScalarGridSpec(
            num_scalar_prefetch=0,
            grid=grid,
            in_specs=[row_spec, row_spec, w_spec, bias_spec, w_spec, bias_spec,
                      pl.BlockSpec(memory_space=pltpu.MemorySpace.SMEM)],
            out_specs=row_spec,
        ),
        compiler_params=pltpu.CompilerParams(
            dimension_semantics=("parallel",)),
    )(query, part, wq, bq2, wp, bp2, param1)


def _reference(query, part, wq, bq, wp, bp, wv, bv, param):
    """Pure-JAX transcription of the PyTorch forward (including dead conv_value)."""
    f_query = (query @ wq + bq)[:, None, :]                  # (B, 1, D)
    f_part = (part @ wp + bp)[:, :, None]                    # (B, D, 1)
    f_value = (part @ wv + bv)[:, :, None]                   # (B, D, 1) -- rebound below
    energy = jnp.matmul(f_query, f_part)                     # (B, 1, 1)
    similarity = jax.nn.softmax(energy, axis=-1)             # (B, 1, 1)
    f_value = jnp.matmul(f_part, similarity) + f_part        # (B, D, 1)
    final_feat = query[:, :, None] + jnp.matmul(f_value, param.reshape(1, 1))
    return jnp.squeeze(final_feat, axis=2)                   # (B, D)


if __name__ == "__main__":
    key = jax.random.PRNGKey(0)
    b, d = 8, 32                      # small shapes: batch=8, in_dim=32
    ks = jax.random.split(key, 9)

    query = jax.random.normal(ks[0], (b, d), dtype=jnp.float32)
    part = jax.random.normal(ks[1], (b, d), dtype=jnp.float32)

    # nn.Linear-equivalent parameters in x @ W + b layout.
    scale = 1.0 / (d ** 0.5)
    wq = jax.random.uniform(ks[2], (d, d), jnp.float32, -scale, scale)
    bq = jax.random.uniform(ks[3], (d,), jnp.float32, -scale, scale)
    wp = jax.random.uniform(ks[4], (d, d), jnp.float32, -scale, scale)
    bp = jax.random.uniform(ks[5], (d,), jnp.float32, -scale, scale)
    wv = jax.random.uniform(ks[6], (d, d), jnp.float32, -scale, scale)
    bv = jax.random.uniform(ks[7], (d,), jnp.float32, -scale, scale)
    # self.param is zero-initialized in the module; use a nonzero value so the
    # fused path is actually exercised (reference uses the same value).
    param = jnp.asarray([0.37], dtype=jnp.float32)

    out = non_local_forward(query, part, wq, bq, wp, bp, wv, bv, param)
    out = jax.block_until_ready(out)

    ref = _reference(query, part, wq, bq, wp, bp, wv, bv, param)
    assert out.shape == (b, d) and out.dtype == query.dtype
    assert jnp.allclose(out, ref, atol=1e-5, rtol=1e-5), "mismatch vs reference"

    print("KERNEL_OK")
</pallas_src>

<mosaic_0001>
module attributes {stable_mosaic.version = 11 : i64} {
  func.func @_nonlocal_kernel(%arg0: i32, %arg1: memref<8x32xf32, #tpu.memory_space<vmem>>, %arg2: memref<8x32xf32, #tpu.memory_space<vmem>>, %arg3: memref<32x32xf32, #tpu.memory_space<vmem>>, %arg4: memref<1x32xf32, #tpu.memory_space<vmem>>, %arg5: memref<32x32xf32, #tpu.memory_space<vmem>>, %arg6: memref<1x32xf32, #tpu.memory_space<vmem>>, %arg7: memref<1xf32, #tpu.memory_space<smem>>, %arg8: memref<8x32xf32, #tpu.memory_space<vmem>>) attributes {dimension_semantics = [#tpu.dimension_semantics<parallel>], iteration_bounds = array<i64: 1>, scalar_prefetch = 0 : i64, scratch_operands = 0 : i64, tpu.core_type = #tpu.core_type<tc>, window_params = [{transform_indices = @transform_0, window_bounds = array<i64: 8, 32>}, {transform_indices = @transform_1, window_bounds = array<i64: 8, 32>}, {pipeline_mode = #tpu.pipeline_mode<synchronous>, transform_indices = @transform_2, window_bounds = array<i64: 32, 32>}, {pipeline_mode = #tpu.pipeline_mode<synchronous>, transform_indices = @transform_3, window_bounds = array<i64: 1, 32>}, {pipeline_mode = #tpu.pipeline_mode<synchronous>, transform_indices = @transform_4, window_bounds = array<i64: 32, 32>}, {pipeline_mode = #tpu.pipeline_mode<synchronous>, transform_indices = @transform_5, window_bounds = array<i64: 1, 32>}, {transform_indices = @transform_6, window_bounds = array<i64: 1>}, {transform_indices = @transform_7, window_bounds = array<i64: 8, 32>}]} {
    %c0 = arith.constant 0 : index
    %c0_0 = arith.constant 0 : index
    %0 = vector.load %arg1[%c0, %c0_0] : memref<8x32xf32, #tpu.memory_space<vmem>>, vector<8x32xf32>
    %c0_1 = arith.constant 0 : index
    %c0_2 = arith.constant 0 : index
    %1 = vector.load %arg2[%c0_1, %c0_2] : memref<8x32xf32, #tpu.memory_space<vmem>>, vector<8x32xf32>
    %c0_3 = arith.constant 0 : index
    %c0_4 = arith.constant 0 : index
    %2 = vector.load %arg3[%c0_3, %c0_4] : memref<32x32xf32, #tpu.memory_space<vmem>>, vector<32x32xf32>
    %cst = arith.constant dense<0.000000e+00> : vector<8x32xf32>
    %3 = tpu.matmul %0, %2, %cst {dimension_numbers = #tpu.dot_dimension_numbers<[1], [0], [0], [1], [0, 0, 1, 1], [], []>} : vector<8x32xf32>, vector<32x32xf32>, vector<8x32xf32> -> vector<8x32xf32>
    %c0_5 = arith.constant 0 : index
    %c0_6 = arith.constant 0 : index
    %4 = vector.load %arg4[%c0_5, %c0_6] : memref<1x32xf32, #tpu.memory_space<vmem>>, vector<1x32xf32>
    %5 = vector.broadcast %4 : vector<1x32xf32> to vector<8x32xf32>
    %6 = arith.addf %3, %5 : vector<8x32xf32>
    %c0_7 = arith.constant 0 : index
    %c0_8 = arith.constant 0 : index
    %7 = vector.load %arg5[%c0_7, %c0_8] : memref<32x32xf32, #tpu.memory_space<vmem>>, vector<32x32xf32>
    %cst_9 = arith.constant dense<0.000000e+00> : vector<8x32xf32>
    %8 = tpu.matmul %1, %7, %cst_9 {dimension_numbers = #tpu.dot_dimension_numbers<[1], [0], [0], [1], [0, 0, 1, 1], [], []>} : vector<8x32xf32>, vector<32x32xf32>, vector<8x32xf32> -> vector<8x32xf32>
    %c0_10 = arith.constant 0 : index
    %c0_11 = arith.constant 0 : index
    %9 = vector.load %arg6[%c0_10, %c0_11] : memref<1x32xf32, #tpu.memory_space<vmem>>, vector<1x32xf32>
    %10 = vector.broadcast %9 : vector<1x32xf32> to vector<8x32xf32>
    %11 = arith.addf %8, %10 : vector<8x32xf32>
    %12 = arith.mulf %6, %11 : vector<8x32xf32>
    %cst_12 = arith.constant dense<0.000000e+00> : vector<8xf32>
    %13 = vector.multi_reduction <add>, %12, %cst_12 [1] : vector<8x32xf32> to vector<8xf32>
    %14 = vector.shape_cast %13 : vector<8xf32> to vector<8x1xf32>
    %cst_13 = arith.constant dense<0xFF800000> : vector<8xf32>
    %15 = vector.multi_reduction <maximumf>, %14, %cst_13 [1] : vector<8x1xf32> to vector<8xf32>
    %16 = vector.shape_cast %15 : vector<8xf32> to vector<8x1xf32>
    %17 = arith.subf %14, %16 : vector<8x1xf32>
    %18 = math.exp %17 : vector<8x1xf32>
    %cst_14 = arith.constant dense<0.000000e+00> : vector<8xf32>
    %19 = vector.multi_reduction <add>, %18, %cst_14 [1] : vector<8x1xf32> to vector<8xf32>
    %20 = vector.shape_cast %19 : vector<8xf32> to vector<8x1xf32>
    %21 = arith.divf %18, %20 : vector<8x1xf32>
    %22 = vector.broadcast %21 : vector<8x1xf32> to vector<8x32xf32>
    %23 = arith.mulf %11, %22 : vector<8x32xf32>
    %24 = arith.addf %23, %11 : vector<8x32xf32>
    %c0_15 = arith.constant 0 : index
    %25 = memref.load %arg7[%c0_15] : memref<1xf32, #tpu.memory_space<smem>>
    %26 = vector.broadcast %25 : f32 to vector<8x32xf32>
    %27 = arith.mulf %24, %26 : vector<8x32xf32>
    %28 = arith.addf %0, %27 : vector<8x32xf32>
    %c0_16 = arith.constant 0 : index
    %c0_17 = arith.constant 0 : index
    %29 = vector.load %arg8[%c0_16, %c0_17] : memref<8x32xf32, #tpu.memory_space<vmem>>, vector<8x32xf32>
    tpu.vector_store %arg8[%c0_16, %c0_17], %28 {strides = array<i32>} : memref<8x32xf32, #tpu.memory_space<vmem>>, vector<8x32xf32>,
    return
  }
  func.func @transform_0(%arg0: i32) -> (i32, i32) {
    %c0_i32 = arith.constant 0 : i32
    %c0_i32_0 = arith.constant 0 : i32
    return %arg0, %c0_i32 : i32, i32
  }
  func.func @transform_1(%arg0: i32) -> (i32, i32) {
    %c0_i32 = arith.constant 0 : i32
    %c0_i32_0 = arith.constant 0 : i32
    return %arg0, %c0_i32 : i32, i32
  }
  func.func @transform_2(%arg0: i32) -> (i32, i32) {
    %c0_i32 = arith.constant 0 : i32
    %c0_i32_0 = arith.constant 0 : i32
    %c0_i32_1 = arith.constant 0 : i32
    return %c0_i32, %c0_i32_0 : i32, i32
  }
  func.func @transform_3(%arg0: i32) -> (i32, i32) {
    %c0_i32 = arith.constant 0 : i32
    %c0_i32_0 = arith.constant 0 : i32
    %c0_i32_1 = arith.constant 0 : i32
    return %c0_i32, %c0_i32_0 : i32, i32
  }
  func.func @transform_4(%arg0: i32) -> (i32, i32) {
    %c0_i32 = arith.constant 0 : i32
    %c0_i32_0 = arith.constant 0 : i32
    %c0_i32_1 = arith.constant 0 : i32
    return %c0_i32, %c0_i32_0 : i32, i32
  }
  func.func @transform_5(%arg0: i32) -> (i32, i32) {
    %c0_i32 = arith.constant 0 : i32
    %c0_i32_0 = arith.constant 0 : i32
    %c0_i32_1 = arith.constant 0 : i32
    return %c0_i32, %c0_i32_0 : i32, i32
  }
  func.func @transform_6(%arg0: i32) -> i32 {
    %c0_i32 = arith.constant 0 : i32
    %c0_i32_0 = arith.constant 0 : i32
    return %c0_i32 : i32
  }
  func.func @transform_7(%arg0: i32) -> (i32, i32) {
    %c0_i32 = arith.constant 0 : i32
    %c0_i32_0 = arith.constant 0 : i32
    return %arg0, %c0_i32 : i32, i32
  }
}

</mosaic_0001>

<llo_original>
// kernel: tpu_custom_call.1
$region0: #{tpu_custom_call.1}
  #allocation0 [shape = 'u32[]', space=smem, size = 0x4, offset = 0x4, fixed_abs, tag = 'smem constant byte address 0x4 - core index']
  #allocation1 [shape = 'u32[72,128]{1,0:T(1,128)}', space=vmem, size = 0x9000, scoped, tag = 'internal scratch']
  #allocation2 [shape = 'f32[1]{0:T(128)S(6)}', space=smem, size = 0x200, scoped, tag = 'scoped memory for tpu_custom_call.1']
  %s0 = inlined_call_operand.hbm [shape: f32[8,32], index: 0, kind: input, shape index: {}]
  %s1 = inlined_call_operand.hbm [shape: f32[8,32], index: 1, kind: input, shape index: {}]
  %s2 = inlined_call_operand.hbm [shape: f32[32,32], index: 2, kind: input, shape index: {}]
  %s3 = inlined_call_operand.vmem [shape: f32[1,32], index: 3, kind: input, shape index: {}]
  %s4 = inlined_call_operand.hbm [shape: f32[32,32], index: 4, kind: input, shape index: {}]
  %s5 = inlined_call_operand.vmem [shape: f32[1,32], index: 5, kind: input, shape index: {}]
  %s6 = inlined_call_operand.<no memory space> [shape: f32[1], index: 6, kind: input, shape index: {}]
  %s7 = inlined_call_operand.hbm [shape: f32[8,32], index: 7, kind: output, shape index: {}]
  %s8 = sld [smem:[#allocation0]]
  $region54: #{tpu_custom_call.1} parent=0
    _
  %s10 = ssub.s32 1, %s8
  %s11 = scalar_select 0, %s10, %s8
  %12 = sst [smem:[#allocation2]] %s6
  $region1: #{tpu_custom_call.1} parent=0
    #allocation3 [shape = 'u8[4096]{0}', space=vmem, size = 0x1000, scoped, tag = 'input window, operand 0, single buffered']
    #allocation4 [shape = 's32[1]{0}', space=sflag, size = 0x4, scoped, tag = 'scoped memory for tpu_custom_call.1']
    #allocation5 [shape = 's32[1]{0}', space=sflag, size = 0x4, scoped, tag = 'scoped memory for tpu_custom_call.1']
    #allocation6 [shape = 'u8[4096]{0}', space=vmem, size = 0x1000, scoped, tag = 'input window, operand 1, single buffered']
    #allocation7 [shape = 's32[1]{0}', space=sflag, size = 0x4, scoped, tag = 'scoped memory for tpu_custom_call.1']
    #allocation8 [shape = 'u8[16384]{0}', space=vmem, size = 0x4000, scoped, tag = 'input window, operand 2, single buffered']
    #allocation9 [shape = 'u8[16384]{0}', space=vmem, size = 0x4000, scoped, tag = 'input window, operand 4, single buffered']
    #allocation10 [shape = 's32[1]{0}', space=sflag, size = 0x4, scoped, tag = 'scoped memory for tpu_custom_call.1']
    #allocation11 [shape = 'u8[4096]{0}', space=vmem, size = 0x1000, scoped, tag = 'output window, operand 0, single buffered']
    %13 = vsyncpa [#allocation4], 0
    %14 = vsyncpa [#allocation7], 0
    %15 = vsyncpa [#allocation10], 0
    %16 = vsyncpa [#allocation5], 0
    // Predicated region
    $region2: #{tpu_custom_call.1} parent=1 // pred_check
      _
    $region3: #{tpu_custom_call.1} parent=1 // pred_check_branch
      %18 = sbr.rel (0) target = $region5
    $region4: #{tpu_custom_call.1} parent=1 // pred_region
      %20 = vsyncadd [#allocation4], 0
      %s22 = sshll.u32 %s0, 4
      %s23 = int_to_ptr.hbm [resolvable:$true] %s22
      %s24 = sshll.u32 [#allocation3], 4
      %s25 = int_to_ptr.vmem [resolvable:$true] %s24
      %27 = dma.hbm_to_vmem [thread:$0]  %s23, 128, %s25, [#allocation4]
    $region5: #{tpu_custom_call.1} parent=1 // pred_fallthru
      _
    // Predicated region
    $region6: #{tpu_custom_call.1} parent=1 // pred_check
      _
    $region7: #{tpu_custom_call.1} parent=1 // pred_check_branch
      %29 = sbr.rel (0) target = $region9
    $region8: #{tpu_custom_call.1} parent=1 // pred_region
      %31 = vsyncadd [#allocation7], 0
      %s33 = sshll.u32 %s1, 4
      %s34 = int_to_ptr.hbm [resolvable:$true] %s33
      %s35 = sshll.u32 [#allocation6], 4
      %s36 = int_to_ptr.vmem [resolvable:$true] %s35
      %38 = dma.hbm_to_vmem [thread:$0]  %s34, 128, %s36, [#allocation7]
    $region9: #{tpu_custom_call.1} parent=1 // pred_fallthru
      _
    // Predicated region
    $region10: #{tpu_custom_call.1} parent=1 // pred_check
      _
    $region11: #{tpu_custom_call.1} parent=1 // pred_check_branch
      %40 = sbr.rel (0) target = $region13
    $region12: #{tpu_custom_call.1} parent=1 // pred_region
      %42 = vsyncadd [#allocation7], 0
      %s43 = sshll.u32 %s2, 4
      %s44 = int_to_ptr.hbm [resolvable:$true] %s43
      %s45 = sshll.u32 [#allocation8], 4
      %s46 = int_to_ptr.vmem [resolvable:$true] %s45
      %51 = dma.hbm_to_vmem [thread:$0]  %s44, 512, %s46, [#allocation7], 128, 128, 8
    $region13: #{tpu_custom_call.1} parent=1 // pred_fallthru
      _
    // Predicated region
    $region14: #{tpu_custom_call.1} parent=1 // pred_check
      _
    $region15: #{tpu_custom_call.1} parent=1 // pred_check_branch
      %53 = sbr.rel (0) target = $region17
    $region16: #{tpu_custom_call.1} parent=1 // pred_region
      _
    $region17: #{tpu_custom_call.1} parent=1 // pred_fallthru
      _
    // Predicated region
    $region18: #{tpu_custom_call.1} parent=1 // pred_check
      _
    $region19: #{tpu_custom_call.1} parent=1 // pred_check_branch
      %55 = sbr.rel (0) target = $region21
    $region20: #{tpu_custom_call.1} parent=1 // pred_region
      %57 = vsyncadd [#allocation10], 0
      %s58 = sshll.u32 %s4, 4
      %s59 = int_to_ptr.hbm [resolvable:$true] %s58
      %s60 = sshll.u32 [#allocation9], 4
      %s61 = int_to_ptr.vmem [resolvable:$true] %s60
      %66 = dma.hbm_to_vmem [thread:$0]  %s59, 512, %s61, [#allocation10], 128, 128, 8
    $region21: #{tpu_custom_call.1} parent=1 // pred_fallthru
      _
    // Predicated region
    $region22: #{tpu_custom_call.1} parent=1 // pred_check
      _
    $region23: #{tpu_custom_call.1} parent=1 // pred_check_branch
      %68 = sbr.rel (0) target = $region25
    $region24: #{tpu_custom_call.1} parent=1 // pred_region
      _
    $region25: #{tpu_custom_call.1} parent=1 // pred_fallthru
      _
    // Predicated region
    $region26: #{tpu_custom_call.1} parent=1 // pred_check
      _
    $region27: #{tpu_custom_call.1} parent=1 // pred_check_branch
      %70 = sbr.rel (0) target = $region29
    $region28: #{tpu_custom_call.1} parent=1 // pred_region
      _
    $region29: #{tpu_custom_call.1} parent=1 // pred_fallthru
      _
    // Predicated region
    $region30: #{tpu_custom_call.1} parent=1 // pred_check
      _
    $region31: #{tpu_custom_call.1} parent=1 // pred_check_branch
      %72 = sbr.rel (0) target = $region33
    $region32: #{tpu_custom_call.1} parent=1 // pred_region
      %74 = dma.done [#allocation4], 128
    $region33: #{tpu_custom_call.1} parent=1 // pred_fallthru
      _
    // Predicated region
    $region34: #{tpu_custom_call.1} parent=1 // pred_check
      _
    $region35: #{tpu_custom_call.1} parent=1 // pred_check_branch
      %76 = sbr.rel (0) target = $region37
    $region36: #{tpu_custom_call.1} parent=1 // pred_region
      %78 = dma.done [#allocation7], 128
    $region37: #{tpu_custom_call.1} parent=1 // pred_fallthru
      _
    // Predicated region
    $region38: #{tpu_custom_call.1} parent=1 // pred_check
      _
    $region39: #{tpu_custom_call.1} parent=1 // pred_check_branch
      %80 = sbr.rel (0) target = $region41
    $region40: #{tpu_custom_call.1} parent=1 // pred_region
      %82 = dma.done [#allocation7], 512
    $region41: #{tpu_custom_call.1} parent=1 // pred_fallthru
      _
    // Predicated region
    $region42: #{tpu_custom_call.1} parent=1 // pred_check
      _
    $region43: #{tpu_custom_call.1} parent=1 // pred_check_branch
      %84 = sbr.rel (0) target = $region45
    $region44: #{tpu_custom_call.1} parent=1 // pred_region
      %86 = dma.done [#allocation10], 512
    $region45: #{tpu_custom_call.1} parent=1 // pred_fallthru
      _
    %v87 = vld [vmem:[#allocation3] sm:$0xff]
    %v88 = vld [vmem:[#allocation6] sm:$0xff]
    %v89 = vld [vmem:[#allocation8] sm:$0xff]
    %v90 = vld [vmem:[#allocation8 + $0x8] sm:$0xff]
    %v91 = vld [vmem:[#allocation8 + $0x10] sm:$0xff]
    %v92 = vld [vmem:[#allocation8 + $0x18] sm:$0xff]
    %v93 = vld [vmem:[%s3] sm:$0x1]
    %v95 = vperm.slane %v93, 0
    %vm97 = vcmask 261120
    %v99 = vsel %vm97, %v87, 0
    %101 = vmatpush.msra.mxu0 0.0
    %102 = vmatpush.msra.mxu0 0.0
    %103 = vmatpush.msra.mxu0 0.0
    %104 = vmatpush.msra.mxu0 0.0
    %105 = vmatpush.msra.mxu0 0.0
    %106 = vmatpush.msra.mxu0 0.0
    %107 = vmatpush.msra.mxu0 0.0
    %108 = vmatpush.msra.mxu0 0.0
    %109 = vmatpush.msra.mxu0 0.0
    %110 = vmatpush.msra.mxu0 0.0
    %111 = vmatpush.msra.mxu0 0.0
    %112 = vmatpush.msra.mxu0 0.0
    %113 = vmatpush.msra.mxu0 %v92
    %114 = vmatpush.msra.mxu0 %v91
    %115 = vmatpush.msra.mxu0 %v90
    %116 = vmatpush.msra.mxu0 %v89
    %117 = vmatmul.f32.gmra.mxu0 %v99
    %v118 = vpop.f32.mrf.mxu0
    %v119 = vadd.f32 %v95, %v118
    %120 = vdwg.mxu0
    %v121 = vld [vmem:[#allocation9] sm:$0xff]
    %v122 = vld [vmem:[#allocation9 + $0x8] sm:$0xff]
    %v123 = vld [vmem:[#allocation9 + $0x10] sm:$0xff]
    %v124 = vld [vmem:[#allocation9 + $0x18] sm:$0xff]
    %v125 = vld [vmem:[%s5] sm:$0x1]
    %v127 = vperm.slane %v125, 0
    %v130 = vsel %vm97, %v88, 0
    %132 = vmatpush.msra.mxu0 0.0
    %133 = vmatpush.msra.mxu0 0.0
    %134 = vmatpush.msra.mxu0 0.0
    %135 = vmatpush.msra.mxu0 0.0
    %136 = vmatpush.msra.mxu0 0.0
    %137 = vmatpush.msra.mxu0 0.0
    %138 = vmatpush.msra.mxu0 0.0
    %139 = vmatpush.msra.mxu0 0.0
    %140 = vmatpush.msra.mxu0 0.0
    %141 = vmatpush.msra.mxu0 0.0
    %142 = vmatpush.msra.mxu0 0.0
    %143 = vmatpush.msra.mxu0 0.0
    %144 = vmatpush.msra.mxu0 %v124
    %145 = vmatpush.msra.mxu0 %v123
    %146 = vmatpush.msra.mxu0 %v122
    %147 = vmatpush.msra.mxu0 %v121
    %148 = vmatmul.f32.gmra.mxu0 %v130
    %v149 = vpop.f32.mrf.mxu0
    %v150 = vadd.f32 %v127, %v149
    %151 = vdwg.mxu0
    %v152 = vmul.f32 %v119, %v150
    %v153 = vsel %vm97, %v152, 0.0
    %154 = vadd.xlane.f32.xlu0 %v153
    %v155 = vpop.xlane.xlu0 %154
    %v156 = vsub.f32 %v155, %v155
    %v157 = vmul.f32 %v156, 1.442695
    %v158 = vpow.pop %v157
    %v159 = vadd.f32 %v158, 0.0
    %v160 = vrcp.pop %v159
    %v161 = vmul.f32 %v159, %v160
    %v162 = vsub.f32 1.0, %v161
    %v163 = vmul.f32 %v160, %v162
    %v164 = vadd.f32 %v160, %v163
    %vm165 = vweird.f32 %v159
    %vm166 = vweird.f32 %v160
    %vm167 = vmor %vm165, %vm166
    %v168 = vsel %vm167, %v160, %v164
    %v169 = vand.u32 2147483647, %v159
    %vm170 = vcmp.eq.f32.partialorder %v169, 8.507059e+37
    %v171 = vand.u32 %v159, 2147483648
    %v172 = vor.u32 1.1754944e-38, %v171
    %v173 = vsel %vm170, %v172, %v168
    %v174 = vmul.f32 %v158, %v173
    %v175 = vmul.f32 %v150, %v174
    %v176 = vadd.f32 %v175, %v150
    %s177 = sld [smem:[#allocation2]]
    %v178 = vstv %s177
    %v179 = vmul.f32 %v176, %v178
    %v180 = vadd.f32 %v87, %v179
    %181 = vst.msk [vmem:[#allocation11] sm:$0xff] %vm97, %v180
    // Predicated region
    $region46: #{tpu_custom_call.1} parent=1 // pred_check
      _
    $region47: #{tpu_custom_call.1} parent=1 // pred_check_branch
      %183 = sbr.rel (0) target = $region49
    $region48: #{tpu_custom_call.1} parent=1 // pred_region
      %185 = vsyncadd [#allocation5], 0
      %s187 = sshll.u32 [#allocation11], 4
      %s188 = int_to_ptr.vmem [resolvable:$true] %s187
      %s189 = sshll.u32 %s7, 4
      %s190 = int_to_ptr.hbm [resolvable:$true] %s189
      %192 = dma.vmem_to_hbm [thread:$0]  %s188, 128, %s190, [#allocation5]
    $region49: #{tpu_custom_call.1} parent=1 // pred_fallthru
      _
    // Predicated region
    $region50: #{tpu_custom_call.1} parent=1 // pred_check
      _
    $region51: #{tpu_custom_call.1} parent=1 // pred_check_branch
      %194 = sbr.rel (0) target = $region53
    $region52: #{tpu_custom_call.1} parent=1 // pred_region
      %196 = dma.done [#allocation5], 128
    $region53: #{tpu_custom_call.1} parent=1 // pred_fallthru
      _
    %197 = vsyncpa [#allocation4], 1
    %198 = vsyncpa [#allocation7], 1
    %199 = vsyncpa [#allocation10], 1
    %200 = vsyncpa [#allocation5], 1

</llo_original>
